<compile_context>
chip_gen: v5e
topology: v5e:2x2
jax: 0.10.0
libtpu: 0.0.40
codegen_flags: <defaults>
</compile_context>

<pallas_src>
import math

import jax
import jax.numpy as jnp
import numpy as np
from jax import lax
from jax.experimental import pallas as pl
from jax.experimental.pallas import tpu as pltpu


def _round_up(x, m):
    return ((x + m - 1) // m) * m


def _time_encode_kernel(t_ref, sel_ref, w_ref, o_ref):
    # t_ref:   (block_r, k)       k packed time samples per row
    # sel_ref: (k, k*dim)         0/1 selector, sel[c, c*dim + d] = 1
    # w_ref:   (1, k*dim)         frequencies tiled k times: w_tile[c*dim+d] = w[d]
    # o_ref:   (block_r, k*dim)   lane-dense output slab
    #
    # Lane-group broadcast of t via the MXU; selector is 0/1 and precision is
    # HIGHEST, so t_expand[r, c*dim + d] == t[r, c] exactly.
    t_expand = jnp.dot(
        t_ref[...], sel_ref[...],
        preferred_element_type=jnp.float32,
        precision=lax.Precision.HIGHEST,
    )
    # Exact f32 elementwise scale (VPU) + cosine (EUP).
    o_ref[...] = jnp.cos(t_expand * w_ref[...])


def time_encode(t, weight, *, target_out_tile_bytes=2 * 1024 * 1024):
    """Pallas TimeEncode forward: cos(t[..., None] * w).

    t:      float array of any shape
    weight: (dim, 1) or (dim,) float32 frequency vector
    returns float32 array of shape t.shape + (dim,)

    Bias is frozen to zero in the PyTorch module and therefore omitted.
    """
    w = jnp.asarray(weight, jnp.float32).reshape(-1)        # (dim,)
    dim = int(w.shape[0])
    orig_shape = t.shape
    t_flat = jnp.asarray(t, jnp.float32).reshape(-1)        # (N,)
    n = int(t_flat.shape[0])

    # ---- lane-dense packing -------------------------------------------------
    k = 128 // math.gcd(dim, 128)     # samples packed per row
    lane_w = k * dim                  # output lane width, multiple of 128

    # ---- row-tile sizing ----------------------------------------------------
    # ~2 MiB of output per grid step (>= ~85% of HBM roofline needs ~1 MiB+
    # tiles); double-buffered out (2x2 MiB) + in + intermediates stays around
    # 8-10 MiB, inside v5e's 16 MiB scoped default and far under v7x's 64 MiB.
    block_r = max(8, (target_out_tile_bytes // (lane_w * 4)) // 8 * 8)

    r = -(-n // k)                                # packed rows needed
    block_r = min(block_r, _round_up(r, 8))       # don't over-tile tiny inputs
    r_pad = _round_up(r, block_r)
    n_pad = r_pad * k

    if n_pad != n:                                # pad only when needed
        t_flat = jnp.pad(t_flat, (0, n_pad - n))
    t_packed = t_flat.reshape(r_pad, k)

    # Tiny constant operands, resident in VMEM across the whole grid.
    sel = np.kron(np.eye(k, dtype=np.float32), np.ones((1, dim), np.float32))
    w_tile = jnp.tile(w, (k,)).reshape(1, lane_w)
    sel = jnp.asarray(sel)

    grid = (r_pad // block_r,)
    cost = pl.CostEstimate(
        flops=int(2 * r_pad * k * lane_w + r_pad * lane_w),
        transcendentals=int(r_pad * lane_w),
        bytes_accessed=int(4 * (r_pad * k + r_pad * lane_w + (k + 1) * lane_w)),
    )

    out = pl.pallas_call(
        _time_encode_kernel,
        out_shape=jax.ShapeDtypeStruct((r_pad, lane_w), jnp.float32),
        grid_spec=pltpu.PrefetchScalarGridSpec(
            num_scalar_prefetch=0,
            grid=grid,
            in_specs=[
                pl.BlockSpec((block_r, k), lambda i: (i, 0)),   # packed t tile
                pl.BlockSpec((k, lane_w), lambda i: (0, 0)),    # selector (resident)
                pl.BlockSpec((1, lane_w), lambda i: (0, 0)),    # tiled weights (resident)
            ],
            out_specs=pl.BlockSpec((block_r, lane_w), lambda i: (i, 0)),
        ),
        compiler_params=pltpu.CompilerParams(
            dimension_semantics=("parallel",),        # shards across v7x's 2 TCs
            vmem_limit_bytes=32 * 1024 * 1024,        # headroom over v5e's 16 MiB default
        ),
        cost_estimate=cost,
    )(t_packed, sel, w_tile)

    # (r_pad, k*dim) and (n_pad, dim) share the same row-major bytes: free reshape.
    out = out.reshape(n_pad, dim)
    if n_pad != n:                                    # slice only when padding happened
        out = out[:n]
    return out.reshape(*orig_shape, dim)


def make_time_encode_params(dim):
    # Identical to TimeEncode.reset_parameters(); bias is frozen at zero.
    weight = (1.0 / 10.0 ** np.linspace(0, 9, dim, dtype=np.float32)).reshape(dim, 1)
    bias = np.zeros((dim,), dtype=np.float32)
    return jnp.asarray(weight), jnp.asarray(bias)


if __name__ == "__main__":
    dim = 32
    weight, bias = make_time_encode_params(dim)   # bias == 0, not passed to the kernel

    key = jax.random.PRNGKey(0)
    t = jax.random.uniform(key, (2, 8), dtype=jnp.float32) * 100.0

    out = jax.block_until_ready(time_encode(t, weight))
    ref = jnp.cos(t[..., None] * weight.reshape(1, 1, dim) + bias)
    assert out.shape == (2, 8, dim), out.shape
    np.testing.assert_allclose(np.asarray(out), np.asarray(ref), rtol=1e-5, atol=2e-5)

    # Ragged size: exercises the pad + tail-slice path.
    t2 = jax.random.uniform(jax.random.PRNGKey(1), (3, 7), dtype=jnp.float32) * 100.0
    out2 = jax.block_until_ready(time_encode(t2, weight))
    ref2 = jnp.cos(t2[..., None] * weight.reshape(1, 1, dim) + bias)
    assert out2.shape == (3, 7, dim), out2.shape
    np.testing.assert_allclose(np.asarray(out2), np.asarray(ref2), rtol=1e-5, atol=2e-5)

    print("KERNEL_OK")
</pallas_src>

<mosaic_0001>
module attributes {stable_mosaic.version = 11 : i64} {
  func.func @_time_encode_kernel(%arg0: i32, %arg1: memref<8x4xf32, #tpu.memory_space<vmem>>, %arg2: memref<4x128xf32, #tpu.memory_space<vmem>>, %arg3: memref<1x128xf32, #tpu.memory_space<vmem>>, %arg4: memref<8x128xf32, #tpu.memory_space<vmem>>) attributes {dimension_semantics = [#tpu.dimension_semantics<parallel>], iteration_bounds = array<i64: 1>, scalar_prefetch = 0 : i64, scratch_operands = 0 : i64, tpu.core_type = #tpu.core_type<tc>, window_params = [{transform_indices = @transform_0, window_bounds = array<i64: 8, 4>}, {pipeline_mode = #tpu.pipeline_mode<synchronous>, transform_indices = @transform_1, window_bounds = array<i64: 4, 128>}, {pipeline_mode = #tpu.pipeline_mode<synchronous>, transform_indices = @transform_2, window_bounds = array<i64: 1, 128>}, {transform_indices = @transform_3, window_bounds = array<i64: 8, 128>}]} {
    %c0 = arith.constant 0 : index
    %c0_0 = arith.constant 0 : index
    %0 = vector.load %arg1[%c0, %c0_0] : memref<8x4xf32, #tpu.memory_space<vmem>>, vector<8x4xf32>
    %c0_1 = arith.constant 0 : index
    %c0_2 = arith.constant 0 : index
    %1 = vector.load %arg2[%c0_1, %c0_2] : memref<4x128xf32, #tpu.memory_space<vmem>>, vector<4x128xf32>
    %cst = arith.constant dense<0.000000e+00> : vector<8x128xf32>
    %2 = tpu.matmul %0, %1, %cst {dimension_numbers = #tpu.dot_dimension_numbers<[1], [0], [0], [1], [0, 0, 1, 1], [], []>, precision = #tpu.contract_precision<fp32>} : vector<8x4xf32>, vector<4x128xf32>, vector<8x128xf32> -> vector<8x128xf32>
    %c0_3 = arith.constant 0 : index
    %c0_4 = arith.constant 0 : index
    %3 = vector.load %arg3[%c0_3, %c0_4] : memref<1x128xf32, #tpu.memory_space<vmem>>, vector<1x128xf32>
    %4 = vector.broadcast %3 : vector<1x128xf32> to vector<8x128xf32>
    %5 = arith.mulf %2, %4 : vector<8x128xf32>
    %6 = math.cos %5 : vector<8x128xf32>
    %c0_5 = arith.constant 0 : index
    %c0_6 = arith.constant 0 : index
    %7 = vector.load %arg4[%c0_5, %c0_6] : memref<8x128xf32, #tpu.memory_space<vmem>>, vector<8x128xf32>
    tpu.vector_store %arg4[%c0_5, %c0_6], %6 {strides = array<i32>} : memref<8x128xf32, #tpu.memory_space<vmem>>, vector<8x128xf32>,
    return
  }
  func.func @transform_0(%arg0: i32) -> (i32, i32) {
    %c0_i32 = arith.constant 0 : i32
    %c0_i32_0 = arith.constant 0 : i32
    return %arg0, %c0_i32 : i32, i32
  }
  func.func @transform_1(%arg0: i32) -> (i32, i32) {
    %c0_i32 = arith.constant 0 : i32
    %c0_i32_0 = arith.constant 0 : i32
    %c0_i32_1 = arith.constant 0 : i32
    return %c0_i32, %c0_i32_0 : i32, i32
  }
  func.func @transform_2(%arg0: i32) -> (i32, i32) {
    %c0_i32 = arith.constant 0 : i32
    %c0_i32_0 = arith.constant 0 : i32
    %c0_i32_1 = arith.constant 0 : i32
    return %c0_i32, %c0_i32_0 : i32, i32
  }
  func.func @transform_3(%arg0: i32) -> (i32, i32) {
    %c0_i32 = arith.constant 0 : i32
    %c0_i32_0 = arith.constant 0 : i32
    return %arg0, %c0_i32 : i32, i32
  }
}

</mosaic_0001>

<llo_original>
// kernel: tpu_custom_call.1
$region0: #{tpu_custom_call.1}
  #allocation0 [shape = 'u32[]', space=smem, size = 0x4, offset = 0x4, fixed_abs, tag = 'smem constant byte address 0x4 - core index']
  #allocation1 [shape = 'u32[72,128]{1,0:T(1,128)}', space=vmem, size = 0x9000, scoped, tag = 'internal scratch']
  %s0 = inlined_call_operand.vmem [shape: f32[8,4], index: 0, kind: input, shape index: {}]
  %s1 = inlined_call_operand.vmem [shape: f32[4,128], index: 1, kind: input, shape index: {}]
  %s2 = inlined_call_operand.vmem [shape: f32[1,128], index: 2, kind: input, shape index: {}]
  %s3 = inlined_call_operand.hbm [shape: f32[8,128], index: 3, kind: output, shape index: {}]
  %s4 = sld [smem:[#allocation0]]
  $region22: #{tpu_custom_call.1} parent=0
    _
  %s6 = ssub.s32 1, %s4
  %s7 = scalar_select 0, %s6, %s4
  $region1: #{tpu_custom_call.1} parent=0
    #allocation2 [shape = 'u8[4096]{0}', space=vmem, size = 0x1000, scoped, tag = 'output window, operand 0, single buffered']
    #allocation3 [shape = 's32[1]{0}', space=sflag, size = 0x4, scoped, tag = 'scoped memory for tpu_custom_call.1']
    %8 = vsyncpa [#allocation3], 0
    // Predicated region
    $region2: #{tpu_custom_call.1} parent=1 // pred_check
      _
    $region3: #{tpu_custom_call.1} parent=1 // pred_check_branch
      %10 = sbr.rel (0) target = $region5
    $region4: #{tpu_custom_call.1} parent=1 // pred_region
      _
    $region5: #{tpu_custom_call.1} parent=1 // pred_fallthru
      _
    // Predicated region
    $region6: #{tpu_custom_call.1} parent=1 // pred_check
      _
    $region7: #{tpu_custom_call.1} parent=1 // pred_check_branch
      %12 = sbr.rel (0) target = $region9
    $region8: #{tpu_custom_call.1} parent=1 // pred_region
      _
    $region9: #{tpu_custom_call.1} parent=1 // pred_fallthru
      _
    // Predicated region
    $region10: #{tpu_custom_call.1} parent=1 // pred_check
      _
    $region11: #{tpu_custom_call.1} parent=1 // pred_check_branch
      %14 = sbr.rel (0) target = $region13
    $region12: #{tpu_custom_call.1} parent=1 // pred_region
      _
    $region13: #{tpu_custom_call.1} parent=1 // pred_fallthru
      _
    %v15 = vld [vmem:[%s0] sm:$0xff]
    %v16 = vld [vmem:[%s1] sm:$0xf]
    %vm17 = vcmask 31744
    %v19 = vsel %vm17, %v15, 0
    %vm21 = vcmask 1043456
    %v23 = vsel %vm21, %v16, 0
    %25 = vmatpush.msra.mxu0 0.0
    %26 = vmatpush.msra.mxu0 0.0
    %27 = vmatpush.msra.mxu0 0.0
    %28 = vmatpush.msra.mxu0 0.0
    %29 = vmatpush.msra.mxu0 0.0
    %30 = vmatpush.msra.mxu0 0.0
    %31 = vmatpush.msra.mxu0 0.0
    %32 = vmatpush.msra.mxu0 0.0
    %33 = vmatpush.msra.mxu0 0.0
    %34 = vmatpush.msra.mxu0 0.0
    %35 = vmatpush.msra.mxu0 0.0
    %36 = vmatpush.msra.mxu0 0.0
    %37 = vmatpush.msra.mxu0 0.0
    %38 = vmatpush.msra.mxu0 0.0
    %39 = vmatpush.msra.mxu0 0.0
    %v40 = vand.u32 %v23, 4294901760
    %41 = vmatpush.msra.mxu0 %v40
    %v42 = vand.u32 %v19, 4294901760
    %v43 = vsub.f32 %v19, %v42
    %v44 = vand.u32 %v43, 4294901760
    %v45 = vsub.f32 %v43, %v44
    %v46 = vand.u32 %v45, 4294901760
    %47 = vmatmul.f32.gmra.mxu0 %v46
    %v48 = vpop.f32.mrf.mxu0
    %v49 = vadd.f32 0.0, %v48
    %50 = vdwg.mxu0
    %51 = vmatpush.msra.mxu0 0.0
    %52 = vmatpush.msra.mxu0 0.0
    %53 = vmatpush.msra.mxu0 0.0
    %54 = vmatpush.msra.mxu0 0.0
    %55 = vmatpush.msra.mxu0 0.0
    %56 = vmatpush.msra.mxu0 0.0
    %57 = vmatpush.msra.mxu0 0.0
    %58 = vmatpush.msra.mxu0 0.0
    %59 = vmatpush.msra.mxu0 0.0
    %60 = vmatpush.msra.mxu0 0.0
    %61 = vmatpush.msra.mxu0 0.0
    %62 = vmatpush.msra.mxu0 0.0
    %63 = vmatpush.msra.mxu0 0.0
    %64 = vmatpush.msra.mxu0 0.0
    %65 = vmatpush.msra.mxu0 0.0
    %v66 = vand.u32 %v23, 4294901760
    %v67 = vsub.f32 %v23, %v66
    %v68 = vand.u32 %v67, 4294901760
    %v69 = vsub.f32 %v67, %v68
    %v70 = vand.u32 %v69, 4294901760
    %71 = vmatpush.msra.mxu0 %v70
    %v72 = vand.u32 %v19, 4294901760
    %73 = vmatmul.f32.gmra.mxu0 %v72
    %v74 = vpop.f32.mrf.mxu0
    %v75 = vadd.f32 %v49, %v74
    %76 = vdwg.mxu0
    %77 = vmatpush.msra.mxu0 0.0
    %78 = vmatpush.msra.mxu0 0.0
    %79 = vmatpush.msra.mxu0 0.0
    %80 = vmatpush.msra.mxu0 0.0
    %81 = vmatpush.msra.mxu0 0.0
    %82 = vmatpush.msra.mxu0 0.0
    %83 = vmatpush.msra.mxu0 0.0
    %84 = vmatpush.msra.mxu0 0.0
    %85 = vmatpush.msra.mxu0 0.0
    %86 = vmatpush.msra.mxu0 0.0
    %87 = vmatpush.msra.mxu0 0.0
    %88 = vmatpush.msra.mxu0 0.0
    %89 = vmatpush.msra.mxu0 0.0
    %90 = vmatpush.msra.mxu0 0.0
    %91 = vmatpush.msra.mxu0 0.0
    %v92 = vand.u32 %v23, 4294901760
    %v93 = vsub.f32 %v23, %v92
    %94 = vmatpush.msra.mxu0 %v93
    %v95 = vand.u32 %v19, 4294901760
    %v96 = vsub.f32 %v19, %v95
    %97 = vmatmul.f32.gmra.mxu0 %v96
    %v98 = vpop.f32.mrf.mxu0
    %v99 = vadd.f32 %v75, %v98
    %100 = vdwg.mxu0
    %101 = vmatpush.msra.mxu0 0.0
    %102 = vmatpush.msra.mxu0 0.0
    %103 = vmatpush.msra.mxu0 0.0
    %104 = vmatpush.msra.mxu0 0.0
    %105 = vmatpush.msra.mxu0 0.0
    %106 = vmatpush.msra.mxu0 0.0
    %107 = vmatpush.msra.mxu0 0.0
    %108 = vmatpush.msra.mxu0 0.0
    %109 = vmatpush.msra.mxu0 0.0
    %110 = vmatpush.msra.mxu0 0.0
    %111 = vmatpush.msra.mxu0 0.0
    %112 = vmatpush.msra.mxu0 0.0
    %113 = vmatpush.msra.mxu0 0.0
    %114 = vmatpush.msra.mxu0 0.0
    %115 = vmatpush.msra.mxu0 0.0
    %v116 = vand.u32 %v23, 4294901760
    %117 = vmatpush.msra.mxu0 %v116
    %v118 = vand.u32 %v19, 4294901760
    %v119 = vsub.f32 %v19, %v118
    %v120 = vand.u32 %v119, 4294901760
    %121 = vmatmul.f32.gmra.mxu0 %v120
    %v122 = vpop.f32.mrf.mxu0
    %v123 = vadd.f32 %v99, %v122
    %124 = vdwg.mxu0
    %125 = vmatpush.msra.mxu0 0.0
    %126 = vmatpush.msra.mxu0 0.0
    %127 = vmatpush.msra.mxu0 0.0
    %128 = vmatpush.msra.mxu0 0.0
    %129 = vmatpush.msra.mxu0 0.0
    %130 = vmatpush.msra.mxu0 0.0
    %131 = vmatpush.msra.mxu0 0.0
    %132 = vmatpush.msra.mxu0 0.0
    %133 = vmatpush.msra.mxu0 0.0
    %134 = vmatpush.msra.mxu0 0.0
    %135 = vmatpush.msra.mxu0 0.0
    %136 = vmatpush.msra.mxu0 0.0
    %137 = vmatpush.msra.mxu0 0.0
    %138 = vmatpush.msra.mxu0 0.0
    %139 = vmatpush.msra.mxu0 0.0
    %v140 = vand.u32 %v23, 4294901760
    %v141 = vsub.f32 %v23, %v140
    %v142 = vand.u32 %v141, 4294901760
    %143 = vmatpush.msra.mxu0 %v142
    %v144 = vand.u32 %v19, 4294901760
    %145 = vmatmul.f32.gmra.mxu0 %v144
    %v146 = vpop.f32.mrf.mxu0
    %v147 = vadd.f32 %v123, %v146
    %148 = vdwg.mxu0
    %149 = vmatpush.msra.mxu0 0.0
    %150 = vmatpush.msra.mxu0 0.0
    %151 = vmatpush.msra.mxu0 0.0
    %152 = vmatpush.msra.mxu0 0.0
    %153 = vmatpush.msra.mxu0 0.0
    %154 = vmatpush.msra.mxu0 0.0
    %155 = vmatpush.msra.mxu0 0.0
    %156 = vmatpush.msra.mxu0 0.0
    %157 = vmatpush.msra.mxu0 0.0
    %158 = vmatpush.msra.mxu0 0.0
    %159 = vmatpush.msra.mxu0 0.0
    %160 = vmatpush.msra.mxu0 0.0
    %161 = vmatpush.msra.mxu0 0.0
    %162 = vmatpush.msra.mxu0 0.0
    %163 = vmatpush.msra.mxu0 0.0
    %v164 = vand.u32 %v23, 4294901760
    %165 = vmatpush.msra.mxu0 %v164
    %v166 = vand.u32 %v19, 4294901760
    %167 = vmatmul.f32.gmra.mxu0 %v166
    %v168 = vpop.f32.mrf.mxu0
    %v169 = vadd.f32 %v147, %v168
    %170 = vdwg.mxu0
    %v171 = vld [vmem:[%s2] sm:$0x1]
    %v173 = vperm.slane %v171, 0
    %v175 = vmul.f32 %v169, %v173
    %v176 = vand.u32 2147483647, %v175
    %vm177 = vcmp.le.f32.partialorder %v176, 0.7853982
    %vm178 = vcmp.lt.s32.totalorder %v175, 0
    %v179 = vand.u32 %v175, 2139095040
    %v180 = vshrl.u32 %v179, 23
    %v181 = vsub.s32 %v180, 127
    %v182 = vand.u32 2147483647, %v175
    %v183 = vand.u32 %v182, 8388607
    %v184 = vor.u32 %v183, 8388608
    %v185 = vsub.s32 0, %v184
    %v186 = vadd.s32 %v181, 1
    %vm187 = vcmp.gt.s32.totalorder %v186, 0
    %v188 = vsel %vm187, %v186, 0
    %v189 = vshrl.u32 %v188, 5
    %v190 = vand.u32 %v188, 31
    %v191 = vsub.s32 32, %v190
    %v192 = vshrl.u32 683565275, %v191
    %v193 = vshll.u32 683565275, %v190
    %v194 = vshrl.u32 2475754826, %v191
    %v195 = vor.u32 %v193, %v194
    %v196 = vshll.u32 2475754826, %v190
    %v197 = vshrl.u32 2131351028, %v191
    %v198 = vor.u32 %v196, %v197
    %v199 = vshll.u32 2131351028, %v190
    %v200 = vshrl.u32 2102212464, %v191
    %v201 = vor.u32 %v199, %v200
    %v202 = vshll.u32 2102212464, %v190
    %v203 = vshrl.u32 920167782, %v191
    %v204 = vor.u32 %v202, %v203
    %v205 = vshll.u32 920167782, %v190
    %v206 = vshrl.u32 1326507024, %v191
    %v207 = vor.u32 %v205, %v206
    %vm208 = vcmp.lt.s32.totalorder %v189, 1
    %vm209 = vcmp.lt.s32.totalorder %v189, 2
    %vm210 = vcmp.lt.s32.totalorder %v189, 3
    %vm211 = vcmp.lt.s32.totalorder %v189, 4
    %v212 = vsel %vm208, %v192, %v195
    %v213 = vsel %vm211, %v201, 2102212464
    %v214 = vsel %vm210, %v198, %v213
    %v215 = vsel %vm209, %v212, %v214
    %v216 = vsel %vm208, %v195, %v198
    %v217 = vsel %vm211, %v204, 920167782
    %v218 = vsel %vm210, %v201, %v217
    %v219 = vsel %vm209, %v216, %v218
    %v220 = vsel %vm208, %v198, %v201
    %v221 = vsel %vm211, %v207, 1326507024
    %v222 = vsel %vm210, %v204, %v221
    %v223 = vsel %vm209, %v220, %v222
    %v224 = vshll.u32 %v184, 8
    %v225 = vand.u32 %v224, 65535
    %v226 = vshrl.u32 %v224, 16
    %v227 = vand.u32 %v223, 65535
    %v228 = vshrl.u32 %v223, 16
    %v229 = vmul.u32 %v225, %v227
    %v230 = vmul.u32 %v225, %v228
    %v231 = vmul.u32 %v226, %v227
    %v232 = vmul.u32 %v226, %v228
    %v233 = vshll.u32 %v230, 16
    %v234 = vshrl.u32 %v230, 16
    %v235 = vshll.u32 %v231, 16
    %v236 = vshrl.u32 %v231, 16
    %vm237 = vc.u32 %v229, %v233
    %v238 = vsel %vm237, 1, 0
    %v239 = vadd.s32 %v229, %v233
    %v240 = vadd.s32 %v232, %v238
    %vm241 = vc.u32 %v239, %v235
    %v242 = vsel %vm241, 1, 0
    %v243 = vadd.s32 %v239, %v235
    %v244 = vadd.s32 %v240, %v242
    %v245 = vadd.s32 %v244, %v234
    %v246 = vadd.s32 %v245, %v236
    %v247 = vand.u32 %v224, 65535
    %v248 = vshrl.u32 %v224, 16
    %v249 = vand.u32 %v219, 65535
    %v250 = vshrl.u32 %v219, 16
    %v251 = vmul.u32 %v247, %v249
    %v252 = vmul.u32 %v247, %v250
    %v253 = vmul.u32 %v248, %v249
    %v254 = vmul.u32 %v248, %v250
    %v255 = vshll.u32 %v252, 16
    %v256 = vshrl.u32 %v252, 16
    %v257 = vshll.u32 %v253, 16
    %v258 = vshrl.u32 %v253, 16
    %vm259 = vc.u32 %v251, %v255
    %v260 = vsel %vm259, 1, 0
    %v261 = vadd.s32 %v251, %v255
    %v262 = vadd.s32 %v254, %v260
    %vm263 = vc.u32 %v261, %v257
    %v264 = vsel %vm263, 1, 0
    %v265 = vadd.s32 %v261, %v257
    %v266 = vadd.s32 %v262, %v264
    %v267 = vadd.s32 %v266, %v256
    %v268 = vadd.s32 %v267, %v258
    %v269 = vmul.u32 %v224, %v215
    %v270 = vadd.s32 %v246, %v265
    %vm271 = vc.u32 %v246, %v265
    %v272 = vadd.s32 %v268, 1
    %v273 = vsel %vm271, %v272, %v268
    %v274 = vadd.s32 %v269, %v273
    %v275 = vadd.s32 %v274, 536870912
    %v276 = vshrl.u32 %v275, 30
    %v277 = vshll.u32 %v276, 30
    %v278 = vsub.s32 %v274, %v277
    %vm279 = vcmp.lt.s32.totalorder %v278, 0
    %v280 = vsub.s32 0, %v278
    %v281 = vsel %vm279, %v280, %v278
    %v282 = vclz %v281
    %v283 = vsub.s32 %v282, 2
    %vm284 = vcmp.gt.s32.totalorder 0, %v283
    %v285 = vsel %vm284, 0, %v283
    %v286 = vsub.s32 32, %v285
    %v287 = vshll.u32 %v278, %v285
    %v288 = vshrl.u32 %v270, %v286
    %v289 = vor.u32 %v287, %v288
    %v290 = vsub.s32 4294967266, %v285
    %v291 = vadd.s32 %v290, 127
    %v292 = vshll.u32 %v291, 23
    %v293 = vor.u32 4788187, %v292
    %v294 = vand.u32 2147483647, %v293
    %v296 = vcvt.s32.f32 %v289
    %v297 = vmul.f32 %v296, %v294
    %v298 = vxor.u32 %v297, 2147483648
    %v299 = vsel %vm178, %v298, %v297
    %v300 = vsub.s32 4, %v276
    %v301 = vsel %vm178, %v300, %v276
    %v302 = vsel %vm177, %v175, %v299
    %v303 = vsel %vm177, 0, %v301
    %v304 = vmul.f32 %v302, %v302
    %v305 = vmul.f32 %v304, -0.001358992
    %v306 = vadd.f32 %v305, 0.041655596
    %v307 = vmul.f32 %v304, %v306
    %v308 = vadd.f32 %v307, -0.4999988
    %v309 = vmul.f32 %v304, %v308
    %v310 = vadd.f32 1.0, %v309
    %v311 = vmul.f32 %v302, %v302
    %v312 = vmul.f32 %v311, -0.00019511016
    %v313 = vadd.f32 %v312, 0.008332121
    %v314 = vmul.f32 %v311, %v313
    %v315 = vadd.f32 %v314, -0.16666654
    %v316 = vmul.f32 %v311, %v315
    %v317 = vadd.f32 %v316, 1.0
    %v318 = vmul.f32 %v317, %v302
    %vm319 = vweird.f32 %v175
    %v320 = vand.u32 %v303, 3
    %vm321 = vcmp.lt.s32.totalorder %v320, 2
    %vm322 = vcmp.eq.s32.totalorder %v320, 0
    %v323 = vxor.u32 %v318, 2147483648
    %v324 = vsel %vm322, %v310, %v323
    %vm325 = vcmp.eq.s32.totalorder %v320, 2
    %v326 = vxor.u32 %v310, 2147483648
    %v327 = vsel %vm325, %v326, %v318
    %v328 = vsel %vm321, %v324, %v327
    %v329 = vsel %vm319, nan, %v328
    %330 = vst [vmem:[#allocation2] sm:$0xff] %v329
    // Predicated region
    $region14: #{tpu_custom_call.1} parent=1 // pred_check
      _
    $region15: #{tpu_custom_call.1} parent=1 // pred_check_branch
      %332 = sbr.rel (0) target = $region17
    $region16: #{tpu_custom_call.1} parent=1 // pred_region
      %334 = vsyncadd [#allocation3], 0
      %s336 = sshll.u32 [#allocation2], 4
      %s337 = int_to_ptr.vmem [resolvable:$true] %s336
      %s338 = sshll.u32 %s3, 4
      %s339 = int_to_ptr.hbm [resolvable:$true] %s338
      %341 = dma.vmem_to_hbm [thread:$0]  %s337, 128, %s339, [#allocation3]
    $region17: #{tpu_custom_call.1} parent=1 // pred_fallthru
      _
    // Predicated region
    $region18: #{tpu_custom_call.1} parent=1 // pred_check
      _
    $region19: #{tpu_custom_call.1} parent=1 // pred_check_branch
      %343 = sbr.rel (0) target = $region21
    $region20: #{tpu_custom_call.1} parent=1 // pred_region
      %345 = dma.done [#allocation3], 128
    $region21: #{tpu_custom_call.1} parent=1 // pred_fallthru
      _
    %346 = vsyncpa [#allocation3], 1

</llo_original>
